<compile_context>
chip_gen: v7x
topology: tpu7x:2x2x1
jax: 0.10.0
libtpu: 0.0.40
codegen_flags: <defaults>
</compile_context>

<pallas_src>
import functools
import math

import jax
import jax.numpy as jnp
from jax.experimental import pallas as pl
from jax.experimental.pallas import tpu as pltpu


def _bilinear_weight_matrix(out_size: int, in_size: int) -> jnp.ndarray:
    """(out_size, in_size) row-stochastic matrix implementing 1-D linear
    interpolation with PyTorch's align_corners=False semantics.  Kept in f32."""
    scale = in_size / out_size
    i = jnp.arange(out_size, dtype=jnp.float32)
    src = jnp.maximum((i + 0.5) * scale - 0.5, 0.0)   # clamp negatives (PyTorch)
    i0 = jnp.floor(src).astype(jnp.int32)
    frac = src - i0.astype(jnp.float32)
    i0 = jnp.clip(i0, 0, in_size - 1)
    i1 = jnp.clip(i0 + 1, 0, in_size - 1)
    w0 = (1.0 - frac)[:, None] * jax.nn.one_hot(i0, in_size, dtype=jnp.float32)
    w1 = frac[:, None] * jax.nn.one_hot(i1, in_size, dtype=jnp.float32)
    return w0 + w1


def _interp_kernel(awt_ref, aht_ref, x_ref, o_ref, *, bsz, h, w, h_out, w_out):
    # awt_ref: (W, W_out)   f32 width-interp matrix (pre-transposed)
    # aht_ref: (H, H_out)   f32 height-interp matrix (pre-transposed)
    # x_ref  : (bsz*H, W)        rows = b*H + h      (batch of bsz (n,c) slices)
    # o_ref  : (bsz*H_out, W_out) rows = b*H_out + ho
    x = x_ref[...].astype(jnp.float32)                                   # (bsz*H, W)

    # ---- width pass: ONE big matmul, M = bsz*H ------------------------------
    t = jnp.dot(x, awt_ref[...], preferred_element_type=jnp.float32)     # (bsz*H, W_out)

    # ---- height pass: put H on the contraction axis, then ONE big matmul
    #      with M = bsz*W_out (batch folded into M, no tiny batched matmuls).
    t = t.reshape(bsz, h, w_out)            # 8-aligned split -> layout no-op
    t = jnp.swapaxes(t, 1, 2)               # (bsz, W_out, H)   minor-dim transpose
    t = t.reshape(bsz * w_out, h)           # 8-aligned merge  -> layout no-op
    u = jnp.dot(t, aht_ref[...], preferred_element_type=jnp.float32)     # (bsz*W_out, H_out)

    # ---- back to (b, ho, wo) row-major and store ----------------------------
    u = u.reshape(bsz, w_out, h_out)
    y = jnp.swapaxes(u, 1, 2)               # (bsz, H_out, W_out)
    o_ref[...] = y.reshape(bsz * h_out, w_out).astype(o_ref.dtype)
    # TODO(synk): when W_out < 128 the stores are lane-masked; a fully lane-dense
    # (bsz, H_out*W_out) output slab would need a lane-merging relayout in-kernel.


def _pick_block(nc, h, w, h_out, w_out):
    """Pick the per-step slice count `bsz` (a divisor of nc):
       - double-buffered in/out blocks + intermediates stay within a VMEM budget
         that is safe on every generation (v7x has only 64 MiB physical VMEM),
       - keep >= 2 grid steps so the 'parallel' axis shards across v7x's 2 TCs,
       - keep block sublane counts 8-aligned (BlockSpec (8,128) rule)."""
    def vmem_tile(r, c):                       # padded f32 VMEM footprint
        return (-(-r // 8) * 8) * (-(-c // 128) * 128) * 4
    per_slice = (2 * (vmem_tile(h, w) + vmem_tile(h_out, w_out))   # dbl-buffered I/O
                 + 2 * vmem_tile(h, w_out))                         # intermediates
    budget = 16 * 1024 * 1024
    cap = max(1, budget // max(per_slice, 1))
    if nc >= 2:
        cap = min(cap, max(1, nc // 2))        # keep >= 2 grid steps (v7x: 2 TCs)
    cap = min(cap, nc)
    best = None
    for d in range(1, cap + 1):
        if nc % d == 0 and (d * h) % 8 == 0 and (d * h_out) % 8 == 0:
            best = d
    if best is None:
        best = nc                              # full-extent block is always legal
    return best


@functools.partial(jax.jit, static_argnames=("scale_factor", "mode"))
def interpolate(x, *, scale_factor=2, mode="bilinear"):
    """Pallas equivalent of Interpolate(scale_factor, mode).forward(x).

    x: (N, C, H, W) float array. Returns (N, C, H*scale, W*scale).
    """
    assert mode == "bilinear", "only 'bilinear' is implemented"
    # TODO(synk): other F.interpolate modes (nearest, bicubic, trilinear) not implemented.
    n, c, h, w = x.shape
    h_out = int(math.floor(h * scale_factor))
    w_out = int(math.floor(w * scale_factor))
    nc = n * c

    # interpolation weights stay in f32 (matches PyTorch's f32 weight path)
    a_w_t = _bilinear_weight_matrix(w_out, w).T        # (W, W_out)
    a_h_t = _bilinear_weight_matrix(h_out, h).T        # (H, H_out)

    bsz = _pick_block(nc, h, w, h_out, w_out)
    grid_len = nc // bsz

    # Free reshapes (contiguous): present 2-D slabs with W / W_out on the lane axis.
    x2 = x.reshape(nc * h, w)

    itemsize = jnp.dtype(x.dtype).itemsize
    cost = pl.CostEstimate(
        flops=2 * nc * (h * w * w_out + w_out * h * h_out),
        transcendentals=0,
        bytes_accessed=(nc * h * w + nc * h_out * w_out) * itemsize
        + (w * w_out + h * h_out) * 4,
    )

    out2 = pl.pallas_call(
        functools.partial(_interp_kernel, bsz=bsz, h=h, w=w, h_out=h_out, w_out=w_out),
        out_shape=jax.ShapeDtypeStruct((nc * h_out, w_out), x.dtype),
        grid_spec=pltpu.PrefetchScalarGridSpec(
            num_scalar_prefetch=0,
            grid=(grid_len,),
            in_specs=[
                pl.BlockSpec((w, w_out), lambda i: (0, 0)),          # resident weights
                pl.BlockSpec((h, h_out), lambda i: (0, 0)),
                pl.BlockSpec((bsz * h, w), lambda i: (i, 0)),
            ],
            out_specs=pl.BlockSpec((bsz * h_out, w_out), lambda i: (i, 0)),
        ),
        compiler_params=pltpu.CompilerParams(
            dimension_semantics=("parallel",),
            vmem_limit_bytes=48 * 1024 * 1024,   # above default scoped limit, < v7x's 64 MiB
        ),
        cost_estimate=cost,
    )(a_w_t, a_h_t, x2)

    return out2.reshape(n, c, h_out, w_out)


if __name__ == "__main__":
    key = jax.random.PRNGKey(0)
    N, C, H, W = 2, 4, 16, 16
    x = jax.random.normal(key, (N, C, H, W), dtype=jnp.float32)

    y = interpolate(x, scale_factor=2, mode="bilinear")
    jax.block_until_ready(y)

    # Reference check against jax.image.resize (half-pixel centers, matches
    # PyTorch align_corners=False for bilinear upsampling).
    y_ref = jax.image.resize(x, (N, C, 2 * H, 2 * W), method="bilinear")
    assert y.shape == (N, C, 2 * H, 2 * W)
    assert jnp.allclose(y, y_ref, atol=1e-5, rtol=1e-5), "mismatch vs reference"

    print("KERNEL_OK")
</pallas_src>

<mosaic_0001>
module attributes {stable_mosaic.version = 11 : i64} {
  func.func @_interp_kernel(%arg0: i32, %arg1: memref<16x32xf32, #tpu.memory_space<vmem>>, %arg2: memref<16x32xf32, #tpu.memory_space<vmem>>, %arg3: memref<64x16xf32, #tpu.memory_space<vmem>>, %arg4: memref<128x32xf32, #tpu.memory_space<vmem>>) attributes {dimension_semantics = [#tpu.dimension_semantics<parallel>], iteration_bounds = array<i64: 2>, scalar_prefetch = 0 : i64, scratch_operands = 0 : i64, tpu.core_type = #tpu.core_type<tc>, window_params = [{pipeline_mode = #tpu.pipeline_mode<synchronous>, transform_indices = @transform_0, window_bounds = array<i64: 16, 32>}, {pipeline_mode = #tpu.pipeline_mode<synchronous>, transform_indices = @transform_1, window_bounds = array<i64: 16, 32>}, {transform_indices = @transform_2, window_bounds = array<i64: 64, 16>}, {transform_indices = @transform_3, window_bounds = array<i64: 128, 32>}]} {
    %c0 = arith.constant 0 : index
    %c0_0 = arith.constant 0 : index
    %0 = vector.load %arg3[%c0, %c0_0] : memref<64x16xf32, #tpu.memory_space<vmem>>, vector<64x16xf32>
    %c0_1 = arith.constant 0 : index
    %c0_2 = arith.constant 0 : index
    %1 = vector.load %arg1[%c0_1, %c0_2] : memref<16x32xf32, #tpu.memory_space<vmem>>, vector<16x32xf32>
    %cst = arith.constant dense<0.000000e+00> : vector<64x32xf32>
    %2 = tpu.matmul %0, %1, %cst {dimension_numbers = #tpu.dot_dimension_numbers<[1], [0], [0], [1], [0, 0, 1, 1], [], []>} : vector<64x16xf32>, vector<16x32xf32>, vector<64x32xf32> -> vector<64x32xf32>
    %3 = vector.shape_cast %2 : vector<64x32xf32> to vector<4x16x32xf32>
    %4 = tpu.transpose %3, [0, 2, 1] : vector<4x16x32xf32> -> vector<4x32x16xf32>
    %5 = vector.shape_cast %4 : vector<4x32x16xf32> to vector<128x16xf32>
    %c0_3 = arith.constant 0 : index
    %c0_4 = arith.constant 0 : index
    %6 = vector.load %arg2[%c0_3, %c0_4] : memref<16x32xf32, #tpu.memory_space<vmem>>, vector<16x32xf32>
    %cst_5 = arith.constant dense<0.000000e+00> : vector<128x32xf32>
    %7 = tpu.matmul %5, %6, %cst_5 {dimension_numbers = #tpu.dot_dimension_numbers<[1], [0], [0], [1], [0, 0, 1, 1], [], []>} : vector<128x16xf32>, vector<16x32xf32>, vector<128x32xf32> -> vector<128x32xf32>
    %8 = vector.shape_cast %7 : vector<128x32xf32> to vector<4x32x32xf32>
    %9 = tpu.transpose %8, [0, 2, 1] : vector<4x32x32xf32> -> vector<4x32x32xf32>
    %10 = vector.shape_cast %9 : vector<4x32x32xf32> to vector<128x32xf32>
    %c0_6 = arith.constant 0 : index
    %c0_7 = arith.constant 0 : index
    %11 = vector.load %arg4[%c0_6, %c0_7] : memref<128x32xf32, #tpu.memory_space<vmem>>, vector<128x32xf32>
    tpu.vector_store %arg4[%c0_6, %c0_7], %10 {strides = array<i32>} : memref<128x32xf32, #tpu.memory_space<vmem>>, vector<128x32xf32>,
    return
  }
  func.func @transform_0(%arg0: i32) -> (i32, i32) {
    %c0_i32 = arith.constant 0 : i32
    %c0_i32_0 = arith.constant 0 : i32
    %c0_i32_1 = arith.constant 0 : i32
    return %c0_i32, %c0_i32_0 : i32, i32
  }
  func.func @transform_1(%arg0: i32) -> (i32, i32) {
    %c0_i32 = arith.constant 0 : i32
    %c0_i32_0 = arith.constant 0 : i32
    %c0_i32_1 = arith.constant 0 : i32
    return %c0_i32, %c0_i32_0 : i32, i32
  }
  func.func @transform_2(%arg0: i32) -> (i32, i32) {
    %c0_i32 = arith.constant 0 : i32
    %c0_i32_0 = arith.constant 0 : i32
    return %arg0, %c0_i32 : i32, i32
  }
  func.func @transform_3(%arg0: i32) -> (i32, i32) {
    %c0_i32 = arith.constant 0 : i32
    %c0_i32_0 = arith.constant 0 : i32
    return %arg0, %c0_i32 : i32, i32
  }
}

</mosaic_0001>

<llo_original>
// kernel: interpolate.1
$region0: #{interpolate.1}
  #allocation0 [shape = 'u32[]', space=smem, size = 0x4, offset = 0x4, fixed_abs, tag = 'smem constant byte address 0x4 - core index']
  #allocation1 [shape = 'u32[144,128]{1,0:T(1,128)}', space=vmem, size = 0x12000, scoped, tag = 'internal scratch']
  %s0 = inlined_call_operand.vmem [shape: f32[16,32], index: 0, kind: input, shape index: {}, may-alias: {0,1}]
  %s1 = inlined_call_operand.vmem [shape: f32[16,32], index: 1, kind: input, shape index: {}, may-alias: {0,1}]
  %s2 = inlined_call_operand.hbm [shape: f32[128,16], index: 2, kind: input, shape index: {}]
  %s3 = inlined_call_operand.hbm [shape: f32[256,32], index: 3, kind: output, shape index: {}]
  %s4 = sld [smem:[#allocation0]]
  $region49: #{interpolate.1} parent=0
    _
  %s6 = ssub.s32 1, %s4
  %s7 = scalar_select 0, %s6, %s4
  $region1: #{interpolate.1} parent=0
    #allocation2 [shape = 'u8[65536]{0}', space=vmem, size = 0x10000, scoped, tag = 'input window, operand 2']
    #allocation3 [shape = 's32[2]{0}', space=sflag, size = 0x8, scoped, tag = 'scoped memory for interpolate.1']
    #allocation4 [shape = 's32[2]{0}', space=sflag, size = 0x8, scoped, tag = 'scoped memory for interpolate.1']
    #allocation5 [shape = 'u8[131072]{0}', space=vmem, size = 0x20000, scoped, tag = 'output window, operand 0']
    %8 = vsyncpa [#allocation3], 0
    %s9 = scalar_lea.sflag [#allocation3], 1
    %10 = vsyncpa %s9, 0
    %11 = vsyncpa [#allocation4], 0
    %s12 = scalar_lea.sflag [#allocation4], 1
    %13 = vsyncpa %s12, 0
    loop: start=0, step=1, limit=4
    $region2: #{interpolate.1} parent=1 // loop_pre_header
      _
    $region3: #{interpolate.1} parent=1 // loop_header
      %s15 = sphi 0, %s19
      %p16 = scmp.ge.s32.totalorder %s15, 4
      %s23 = sphi 0, %s23
      %s25 = sphi 0, %s23
      %s26 = sphi 0, %s25
      %s40 = sphi 0, %s26
      %s44 = sphi 0, %s44
      %s46 = sphi 0, %s44
      %s47 = sphi 0, %s46
      %s61 = sphi 0, %s47
      %s67 = sphi 0, %s69
      %s70 = sphi 0, %s67
      %s71 = sphi 0, %s70
      %s87 = sphi 0, %s71
      %s93 = sphi 0, %s95
      %s96 = sphi 0, %s93
      %s97 = sphi 0, %s96
      %s113 = sphi 0, %s97
    $region4: #{interpolate.1} parent=1 // loop_header_branch
      %18 = sbr.rel (%p16) target = $region8
    $region5: #{interpolate.1} parent=1 // loop_body
      %s20 = ssub.s32 %s15, 1
      %s21 = ssub.s32 %s15, 2
      %s22 = sadd.s32 %s15, 1
      %s24 = sadd.s32 %s23, 1
      %p27 = scmp.eq.s32.totalorder %s15, 1
      %p28 = scmp.ne.s32.totalorder %s23, %s25
      %p29 = scmp.eq.s32.totalorder %s15, 0
      %p30 = por %p28, %p29
      %p31 = scmp.ne.s32.totalorder %s23, %s25
      %p32 = scmp.eq.s32.totalorder %s20, 1
      %p33 = por %p31, %p32
      %p34 = scmp.ne.s32.totalorder %s25, %s26
      %p35 = scmp.eq.s32.totalorder %s20, 0
      %p36 = por %p34, %p35
      %p37 = scmp.ne.s32.totalorder %s25, %s26
      %p38 = scmp.eq.s32.totalorder %s21, 1
      %p39 = por %p37, %p38
      %p41 = scmp.ne.s32.totalorder %s26, %s40
      %p42 = scmp.eq.s32.totalorder %s21, 0
      %p43 = por %p41, %p42
      %s45 = sadd.s32 %s44, 1
      %p48 = scmp.eq.s32.totalorder %s15, 1
      %p49 = scmp.ne.s32.totalorder %s44, %s46
      %p50 = scmp.eq.s32.totalorder %s15, 0
      %p51 = por %p49, %p50
      %p52 = scmp.ne.s32.totalorder %s44, %s46
      %p53 = scmp.eq.s32.totalorder %s20, 1
      %p54 = por %p52, %p53
      %p55 = scmp.ne.s32.totalorder %s46, %s47
      %p56 = scmp.eq.s32.totalorder %s20, 0
      %p57 = por %p55, %p56
      %p58 = scmp.ne.s32.totalorder %s46, %s47
      %p59 = scmp.eq.s32.totalorder %s21, 1
      %p60 = por %p58, %p59
      %p62 = scmp.ne.s32.totalorder %s47, %s61
      %p63 = scmp.eq.s32.totalorder %s21, 0
      %p64 = por %p62, %p63
      %s65 = ssub.s32 %s15, %s22
      %p66 = scmp.eq.s32.totalorder %s65, 0
      %s68 = sadd.s32 %s67, 1
      %s69 = scalar_select %p66, %s67, %s68
      %p72 = pneg %p66
      %p73 = scmp.eq.s32.totalorder %s15, 1
      %p74 = por %p72, %p73
      %p75 = scmp.ne.s32.totalorder %s67, %s70
      %p76 = scmp.eq.s32.totalorder %s15, 0
      %p77 = por %p75, %p76
      %p78 = scmp.ne.s32.totalorder %s67, %s70
      %p79 = scmp.eq.s32.totalorder %s20, 1
      %p80 = por %p78, %p79
      %p81 = scmp.ne.s32.totalorder %s70, %s71
      %p82 = scmp.eq.s32.totalorder %s20, 0
      %p83 = por %p81, %p82
      %p84 = scmp.ne.s32.totalorder %s70, %s71
      %p85 = scmp.eq.s32.totalorder %s21, 1
      %p86 = por %p84, %p85
      %p88 = scmp.ne.s32.totalorder %s71, %s87
      %p89 = scmp.eq.s32.totalorder %s21, 0
      %p90 = por %p88, %p89
      %s91 = ssub.s32 %s15, %s22
      %p92 = scmp.eq.s32.totalorder %s91, 0
      %s94 = sadd.s32 %s93, 1
      %s95 = scalar_select %p92, %s93, %s94
      %p98 = pneg %p92
      %p99 = scmp.eq.s32.totalorder %s15, 1
      %p100 = por %p98, %p99
      %p101 = scmp.ne.s32.totalorder %s93, %s96
      %p102 = scmp.eq.s32.totalorder %s15, 0
      %p103 = por %p101, %p102
      %p104 = scmp.ne.s32.totalorder %s93, %s96
      %p105 = scmp.eq.s32.totalorder %s20, 1
      %p106 = por %p104, %p105
      %p107 = scmp.ne.s32.totalorder %s96, %s97
      %p108 = scmp.eq.s32.totalorder %s20, 0
      %p109 = por %p107, %p108
      %p110 = scmp.ne.s32.totalorder %s96, %s97
      %p111 = scmp.eq.s32.totalorder %s21, 1
      %p112 = por %p110, %p111
      %p114 = scmp.ne.s32.totalorder %s97, %s113
      %p115 = scmp.eq.s32.totalorder %s21, 0
      %p116 = por %p114, %p115
      %p117 = scmp.le.s32.totalorder 1, %s15
      %p118 = scmp.lt.s32.totalorder %s15, 3
      %p119 = pnand %p117, %p118
      %p120 = pneg %p119
      // Predicated region
      $region9: #{interpolate.1} parent=5 // pred_check
        _
      $region10: #{interpolate.1} parent=5 // pred_check_branch
        %122 = sbr.rel (%p119) target = $region12
      $region11: #{interpolate.1} parent=5 // pred_region
        %s123 = ssub.s32 %s15, 1
        // Predicated region
        $region13: #{interpolate.1} parent=11 // pred_check
          %p124 = pneg %p36
        $region14: #{interpolate.1} parent=11 // pred_check_branch
          %126 = sbr.rel (%p124) target = $region16
        $region15: #{interpolate.1} parent=11 // pred_region
          _
        $region16: #{interpolate.1} parent=11 // pred_fallthru
          _
        // Predicated region
        $region17: #{interpolate.1} parent=11 // pred_check
          %p127 = pneg %p57
        $region18: #{interpolate.1} parent=11 // pred_check_branch
          %129 = sbr.rel (%p127) target = $region20
        $region19: #{interpolate.1} parent=11 // pred_region
          _
        $region20: #{interpolate.1} parent=11 // pred_fallthru
          _
      $region12: #{interpolate.1} parent=5 // pred_fallthru
        _
      %p130 = scmp.lt.s32.totalorder %s15, 2
      // Predicated region
      $region21: #{interpolate.1} parent=5 // pred_check
        %p131 = pneg %p130
      $region22: #{interpolate.1} parent=5 // pred_check_branch
        %133 = sbr.rel (%p131) target = $region24
      $region23: #{interpolate.1} parent=5 // pred_region
        // Predicated region
        $region25: #{interpolate.1} parent=23 // pred_check
          %p134 = pneg %p77
        $region26: #{interpolate.1} parent=23 // pred_check_branch
          %136 = sbr.rel (%p134) target = $region28
        $region27: #{interpolate.1} parent=23 // pred_region
          %s137 = sand.u32 %s67, 1
          %s138 = scalar_lea.sflag [#allocation3], %s137
          %s139 = sand.u32 %s67, 1
          %s140 = smul.addr %s139, 64
          %s141 = scalar_lea.vmem [#allocation2], %s140
          %s142 = smul.u32 8, %s15
          %s144 = ssub.s32 1024, 1024
          %145 = vsyncadd %s138, %s144
          %s146 = smul.addr %s142, 128
          %s147 = scalar_lea.hbm %s2, %s146
          %s148 = sshll.u32 %s141, 4
          %s149 = int_to_ptr.vmem [resolvable:$true] %s148
          %154 = dma.hbm_to_vmem [thread:$0]  %s147, 1024, %s149, %s138, 128, 128, 8
        $region28: #{interpolate.1} parent=23 // pred_fallthru
          _
      $region24: #{interpolate.1} parent=5 // pred_fallthru
        _
      %p155 = scmp.le.s32.totalorder 1, %s15
      %p156 = scmp.lt.s32.totalorder %s15, 3
      %p157 = pnand %p155, %p156
      %p158 = pneg %p157
      // Predicated region
      $region29: #{interpolate.1} parent=5 // pred_check
        _
      $region30: #{interpolate.1} parent=5 // pred_check_branch
        %160 = sbr.rel (%p157) target = $region32
      $region31: #{interpolate.1} parent=5 // pred_region
        %s161 = ssub.s32 %s15, 1
        %s162 = sand.u32 %s70, 1
        %s163 = scalar_lea.sflag [#allocation3], %s162
        %s164 = sand.u32 %s70, 1
        %s165 = smul.addr %s164, 64
        %s166 = scalar_lea.vmem [#allocation2], %s165
        // Predicated region
        $region33: #{interpolate.1} parent=31 // pred_check
          %p167 = pneg %p83
        $region34: #{interpolate.1} parent=31 // pred_check_branch
          %169 = sbr.rel (%p167) target = $region36
        $region35: #{interpolate.1} parent=31 // pred_region
          %170 = dma.done %s163, 1024
        $region36: #{interpolate.1} parent=31 // pred_fallthru
          _
        %p171 = pneg %p36
        %p172 = pneg %p33
        %p173 = pneg %p57
        %p174 = pneg %p54
        %s175 = sand.u32 %s70, 1
        %s176 = scalar_lea.sflag [#allocation3], %s175
        %s177 = sand.u32 %s70, 1
        %s178 = smul.addr %s177, 64
        %s179 = scalar_lea.vmem [#allocation2], %s178
        %p180 = pneg %p83
        %p181 = pneg %p80
        %p182 = pneg %p109
        %p183 = pneg %p106
        %s184 = sand.u32 %s96, 1
        %s185 = scalar_lea.sflag [#allocation4], %s184
        %s186 = sand.u32 %s96, 1
        %s187 = smul.addr %s186, 128
        %s188 = scalar_lea.vmem [#allocation5], %s187
        %s189 = smul.u32 8, %s20
        %s190 = smul.u32 16, %s20
        %v191 = vld [vmem:[%s166] sm:$0xff]
        %v192 = vld [vmem:[%s166 + $0x8] sm:$0xff]
        %v193 = vld [vmem:[%s166 + $0x10] sm:$0xff]
        %v194 = vld [vmem:[%s166 + $0x18] sm:$0xff]
        %v195 = vld [vmem:[%s166 + $0x20] sm:$0xff]
        %v196 = vld [vmem:[%s166 + $0x28] sm:$0xff]
        %v197 = vld [vmem:[%s166 + $0x30] sm:$0xff]
        %v198 = vld [vmem:[%s166 + $0x38] sm:$0xff]
        %v199 = vld [vmem:[%s0] sm:$0xff]
        %v200 = vld [vmem:[%s0 + $0x8] sm:$0xff]
        %vm201 = vcmask 130048
        %v203 = vsel %vm201, %v191, 0
        %v206 = vsel %vm201, %v192, 0
        %v209 = vsel %vm201, %v193, 0
        %v212 = vsel %vm201, %v194, 0
        %v215 = vsel %vm201, %v195, 0
        %v218 = vsel %vm201, %v196, 0
        %v221 = vsel %vm201, %v197, 0
        %v224 = vsel %vm201, %v198, 0
        %226 = vmatprep.subr.mxu0 0.0
        %227 = vmatpush1.msra.mxu0 %v199
        %228 = vmatprep.subr.mxu0 0.0
        %229 = vmatpush1.msra.mxu0 %v200
        %230 = vmatprep.subr.mxu0 0.0
        %231 = vmatpush1.msra.mxu0 0.0
        %232 = vmatprep.subr.mxu0 0.0
        %233 = vmatpush1.msra.mxu0 0.0
        %234 = vmatprep.subr.mxu0 0.0
        %235 = vmatpush1.msra.mxu0 0.0
        %236 = vmatprep.subr.mxu0 0.0
        %237 = vmatpush1.msra.mxu0 0.0
        %238 = vmatprep.subr.mxu0 0.0
        %239 = vmatpush1.msra.mxu0 0.0
        %240 = vmatprep.subr.mxu0 0.0
        %241 = vmatpush1.msra.mxu0 0.0
        %242 = vmatprep.subr.mxu0 0.0
        %243 = vmatpush1.msra.mxu0 0.0
        %244 = vmatprep.subr.mxu0 0.0
        %245 = vmatpush1.msra.mxu0 0.0
        %246 = vmatprep.subr.mxu0 0.0
        %247 = vmatpush1.msra.mxu0 0.0
        %248 = vmatprep.subr.mxu0 0.0
        %249 = vmatpush1.msra.mxu0 0.0
        %250 = vmatprep.subr.mxu0 0.0
        %251 = vmatpush1.msra.mxu0 0.0
        %252 = vmatprep.subr.mxu0 0.0
        %253 = vmatpush1.msra.mxu0 0.0
        %254 = vmatprep.subr.mxu0 0.0
        %255 = vmatpush1.msra.mxu0 0.0
        %256 = vmatprep.subr.mxu0 0.0
        %257 = vmatpush1.msra.mxu0 0.0
        %258 = vmatprep.subr.mxu0 0.0
        %259 = vmatpush1.msra.mxu0 0.0
        %260 = vmatprep.subr.mxu0 0.0
        %261 = vmatpush1.msra.mxu0 0.0
        %262 = vmatprep.subr.mxu0 0.0
        %263 = vmatpush1.msra.mxu0 0.0
        %264 = vmatprep.subr.mxu0 0.0
        %265 = vmatpush1.msra.mxu0 0.0
        %266 = vmatprep.subr.mxu0 0.0
        %267 = vmatpush1.msra.mxu0 0.0
        %268 = vmatprep.subr.mxu0 0.0
        %269 = vmatpush1.msra.mxu0 0.0
        %270 = vmatprep.subr.mxu0 0.0
        %271 = vmatpush1.msra.mxu0 0.0
        %272 = vmatprep.subr.mxu0 0.0
        %273 = vmatpush1.msra.mxu0 0.0
        %274 = vmatprep.subr.mxu0 0.0
        %275 = vmatpush1.msra.mxu0 0.0
        %276 = vmatprep.subr.mxu0 0.0
        %277 = vmatpush1.msra.mxu0 0.0
        %278 = vmatprep.subr.mxu0 0.0
        %279 = vmatpush1.msra.mxu0 0.0
        %280 = vmatprep.subr.mxu0 0.0
        %281 = vmatpush1.msra.mxu0 0.0
        %282 = vmatprep.subr.mxu0 0.0
        %283 = vmatpush1.msra.mxu0 0.0
        %284 = vmatprep.subr.mxu0 0.0
        %285 = vmatpush1.msra.mxu0 0.0
        %286 = vmatprep.subr.mxu0 0.0
        %287 = vmatpush1.msra.mxu0 0.0
        %288 = vmatprep.subr.mxu0 0.0
        %289 = vmatpush1.msra.mxu0 0.0
        %290 = vmatprep.mubr.f32.mxu0 0.0
        %291 = vmatmul.mubr.f32.gmra.mrb[0].mxu0 %v203
        %v292 = vpop.f32.mrb[0].mxu0
        %v293 = vadd.f32 0.0, %v292
        %v294 = vpop.f32.mrb[0].mxu0
        %295 = vmatprep.mubr.f32.mxu0 0.0
        %296 = vmatmul.mubr.f32.gmra.mrb[0].mxu0 %v206
        %v297 = vpop.f32.mrb[0].mxu0
        %v298 = vadd.f32 0.0, %v297
        %v299 = vpop.f32.mrb[0].mxu0
        %300 = vmatprep.mubr.f32.mxu0 0.0
        %301 = vmatmul.mubr.f32.gmra.mrb[0].mxu0 %v209
        %v302 = vpop.f32.mrb[0].mxu0
        %v303 = vadd.f32 0.0, %v302
        %v304 = vpop.f32.mrb[0].mxu0
        %305 = vmatprep.mubr.f32.mxu0 0.0
        %306 = vmatmul.mubr.f32.gmra.mrb[0].mxu0 %v212
        %v307 = vpop.f32.mrb[0].mxu0
        %v308 = vadd.f32 0.0, %v307
        %v309 = vpop.f32.mrb[0].mxu0
        %310 = vmatprep.mubr.f32.mxu0 0.0
        %311 = vmatmul.mubr.f32.gmra.mrb[0].mxu0 %v215
        %v312 = vpop.f32.mrb[0].mxu0
        %v313 = vadd.f32 0.0, %v312
        %v314 = vpop.f32.mrb[0].mxu0
        %315 = vmatprep.mubr.f32.mxu0 0.0
        %316 = vmatmul.mubr.f32.gmra.mrb[0].mxu0 %v218
        %v317 = vpop.f32.mrb[0].mxu0
        %v318 = vadd.f32 0.0, %v317
        %v319 = vpop.f32.mrb[0].mxu0
        %320 = vmatprep.mubr.f32.mxu0 0.0
        %321 = vmatmul.mubr.f32.gmra.mrb[0].mxu0 %v221
        %v322 = vpop.f32.mrb[0].mxu0
        %v323 = vadd.f32 0.0, %v322
        %v324 = vpop.f32.mrb[0].mxu0
        %325 = vmatprep.mubr.f32.mxu0 0.0
        %326 = vmatmul.mubr.f32.gmra.mrb[0].mxu0 %v224
        %v327 = vpop.f32.mrb[0].mxu0
        %v328 = vadd.f32 0.0, %v327
        %v329 = vpop.f32.mrb[0].mxu0
        %330 = vdwg.mxu0
        %331 = vxpose.xlu0.b32.start [1/16] %v293, 128
        %332 = vxpose.xlu0.b32.cont [2/16] %v298, 128
        %333 = vxpose.xlu0.b32.cont [3/16] 0.0, 128
        %334 = vxpose.xlu0.b32.cont [4/16] 0.0, 128
        %335 = vxpose.xlu0.b32.cont [5/16] 0.0, 128
        %336 = vxpose.xlu0.b32.cont [6/16] 0.0, 128
        %337 = vxpose.xlu0.b32.cont [7/16] 0.0, 128
        %338 = vxpose.xlu0.b32.cont [8/16] 0.0, 128
        %339 = vxpose.xlu0.b32.cont [9/16] 0.0, 128
        %340 = vxpose.xlu0.b32.cont [10/16] 0.0, 128
        %341 = vxpose.xlu0.b32.cont [11/16] 0.0, 128
        %342 = vxpose.xlu0.b32.cont [12/16] 0.0, 128
        %343 = vxpose.xlu0.b32.cont [13/16] 0.0, 128
        %344 = vxpose.xlu0.b32.cont [14/16] 0.0, 128
        %345 = vxpose.xlu0.b32.cont [15/16] 0.0, 128
        %346 = vxpose.xlu0.b32.end [16/16] 0.0, 128
        %v347 = vpop.trf.xlu0
        %v348 = vpop.trf.xlu0
        %v349 = vpop.trf.xlu0
        %v350 = vpop.trf.xlu0
        %v351 = vpop.trf.xlu0
        %v352 = vpop.trf.xlu0
        %v353 = vpop.trf.xlu0
        %v354 = vpop.trf.xlu0
        %v355 = vpop.trf.xlu0
        %v356 = vpop.trf.xlu0
        %v357 = vpop.trf.xlu0
        %v358 = vpop.trf.xlu0
        %v359 = vpop.trf.xlu0
        %v360 = vpop.trf.xlu0
        %v361 = vpop.trf.xlu0
        %v362 = vpop.trf.xlu0
        %363 = vxpose.xlu0.b32.start [1/16] %v303, 128
        %364 = vxpose.xlu0.b32.cont [2/16] %v308, 128
        %365 = vxpose.xlu0.b32.cont [3/16] 0.0, 128
        %366 = vxpose.xlu0.b32.cont [4/16] 0.0, 128
        %367 = vxpose.xlu0.b32.cont [5/16] 0.0, 128
        %368 = vxpose.xlu0.b32.cont [6/16] 0.0, 128
        %369 = vxpose.xlu0.b32.cont [7/16] 0.0, 128
        %370 = vxpose.xlu0.b32.cont [8/16] 0.0, 128
        %371 = vxpose.xlu0.b32.cont [9/16] 0.0, 128
        %372 = vxpose.xlu0.b32.cont [10/16] 0.0, 128
        %373 = vxpose.xlu0.b32.cont [11/16] 0.0, 128
        %374 = vxpose.xlu0.b32.cont [12/16] 0.0, 128
        %375 = vxpose.xlu0.b32.cont [13/16] 0.0, 128
        %376 = vxpose.xlu0.b32.cont [14/16] 0.0, 128
        %377 = vxpose.xlu0.b32.cont [15/16] 0.0, 128
        %378 = vxpose.xlu0.b32.end [16/16] 0.0, 128
        %v379 = vpop.trf.xlu0
        %v380 = vpop.trf.xlu0
        %v381 = vpop.trf.xlu0
        %v382 = vpop.trf.xlu0
        %v383 = vpop.trf.xlu0
        %v384 = vpop.trf.xlu0
        %v385 = vpop.trf.xlu0
        %v386 = vpop.trf.xlu0
        %v387 = vpop.trf.xlu0
        %v388 = vpop.trf.xlu0
        %v389 = vpop.trf.xlu0
        %v390 = vpop.trf.xlu0
        %v391 = vpop.trf.xlu0
        %v392 = vpop.trf.xlu0
        %v393 = vpop.trf.xlu0
        %v394 = vpop.trf.xlu0
        %395 = vxpose.xlu0.b32.start [1/16] %v313, 128
        %396 = vxpose.xlu0.b32.cont [2/16] %v318, 128
        %397 = vxpose.xlu0.b32.cont [3/16] 0.0, 128
        %398 = vxpose.xlu0.b32.cont [4/16] 0.0, 128
        %399 = vxpose.xlu0.b32.cont [5/16] 0.0, 128
        %400 = vxpose.xlu0.b32.cont [6/16] 0.0, 128
        %401 = vxpose.xlu0.b32.cont [7/16] 0.0, 128
        %402 = vxpose.xlu0.b32.cont [8/16] 0.0, 128
        %403 = vxpose.xlu0.b32.cont [9/16] 0.0, 128
        %404 = vxpose.xlu0.b32.cont [10/16] 0.0, 128
        %405 = vxpose.xlu0.b32.cont [11/16] 0.0, 128
        %406 = vxpose.xlu0.b32.cont [12/16] 0.0, 128
        %407 = vxpose.xlu0.b32.cont [13/16] 0.0, 128
        %408 = vxpose.xlu0.b32.cont [14/16] 0.0, 128
        %409 = vxpose.xlu0.b32.cont [15/16] 0.0, 128
        %410 = vxpose.xlu0.b32.end [16/16] 0.0, 128
        %v411 = vpop.trf.xlu0
        %v412 = vpop.trf.xlu0
        %v413 = vpop.trf.xlu0
        %v414 = vpop.trf.xlu0
        %v415 = vpop.trf.xlu0
        %v416 = vpop.trf.xlu0
        %v417 = vpop.trf.xlu0
        %v418 = vpop.trf.xlu0
        %v419 = vpop.trf.xlu0
        %v420 = vpop.trf.xlu0
        %v421 = vpop.trf.xlu0
        %v422 = vpop.trf.xlu0
        %v423 = vpop.trf.xlu0
        %v424 = vpop.trf.xlu0
        %v425 = vpop.trf.xlu0
        %v426 = vpop.trf.xlu0
        %427 = vxpose.xlu0.b32.start [1/16] %v323, 128
        %428 = vxpose.xlu0.b32.cont [2/16] %v328, 128
        %429 = vxpose.xlu0.b32.cont [3/16] 0.0, 128
        %430 = vxpose.xlu0.b32.cont [4/16] 0.0, 128
        %431 = vxpose.xlu0.b32.cont [5/16] 0.0, 128
        %432 = vxpose.xlu0.b32.cont [6/16] 0.0, 128
        %433 = vxpose.xlu0.b32.cont [7/16] 0.0, 128
        %434 = vxpose.xlu0.b32.cont [8/16] 0.0, 128
        %435 = vxpose.xlu0.b32.cont [9/16] 0.0, 128
        %436 = vxpose.xlu0.b32.cont [10/16] 0.0, 128
        %437 = vxpose.xlu0.b32.cont [11/16] 0.0, 128
        %438 = vxpose.xlu0.b32.cont [12/16] 0.0, 128
        %439 = vxpose.xlu0.b32.cont [13/16] 0.0, 128
        %440 = vxpose.xlu0.b32.cont [14/16] 0.0, 128
        %441 = vxpose.xlu0.b32.cont [15/16] 0.0, 128
        %442 = vxpose.xlu0.b32.end [16/16] 0.0, 128
        %v443 = vpop.trf.xlu0
        %v444 = vpop.trf.xlu0
        %v445 = vpop.trf.xlu0
        %v446 = vpop.trf.xlu0
        %v447 = vpop.trf.xlu0
        %v448 = vpop.trf.xlu0
        %v449 = vpop.trf.xlu0
        %v450 = vpop.trf.xlu0
        %v451 = vpop.trf.xlu0
        %v452 = vpop.trf.xlu0
        %v453 = vpop.trf.xlu0
        %v454 = vpop.trf.xlu0
        %v455 = vpop.trf.xlu0
        %v456 = vpop.trf.xlu0
        %v457 = vpop.trf.xlu0
        %v458 = vpop.trf.xlu0
        %v459 = vld [vmem:[%s1] sm:$0xff]
        %v460 = vld [vmem:[%s1 + $0x8] sm:$0xff]
        %v462 = vsel %vm201, %v347, 0
        %v465 = vsel %vm201, %v348, 0
        %v468 = vsel %vm201, %v349, 0
        %v471 = vsel %vm201, %v350, 0
        %v474 = vsel %vm201, %v379, 0
        %v477 = vsel %vm201, %v380, 0
        %v480 = vsel %vm201, %v381, 0
        %v483 = vsel %vm201, %v382, 0
        %v486 = vsel %vm201, %v411, 0
        %v489 = vsel %vm201, %v412, 0
        %v492 = vsel %vm201, %v413, 0
        %v495 = vsel %vm201, %v414, 0
        %v498 = vsel %vm201, %v443, 0
        %v501 = vsel %vm201, %v444, 0
        %v504 = vsel %vm201, %v445, 0
        %v507 = vsel %vm201, %v446, 0
        %509 = vmatprep.subr.mxu0 0.0
        %510 = vmatpush1.msra.mxu0 %v459
        %511 = vmatprep.subr.mxu0 0.0
        %512 = vmatpush1.msra.mxu0 %v460
        %513 = vmatprep.subr.mxu0 0.0
        %514 = vmatpush1.msra.mxu0 0.0
        %515 = vmatprep.subr.mxu0 0.0
        %516 = vmatpush1.msra.mxu0 0.0
        %517 = vmatprep.subr.mxu0 0.0
        %518 = vmatpush1.msra.mxu0 0.0
        %519 = vmatprep.subr.mxu0 0.0
        %520 = vmatpush1.msra.mxu0 0.0
        %521 = vmatprep.subr.mxu0 0.0
        %522 = vmatpush1.msra.mxu0 0.0
        %523 = vmatprep.subr.mxu0 0.0
        %524 = vmatpush1.msra.mxu0 0.0
        %525 = vmatprep.subr.mxu0 0.0
        %526 = vmatpush1.msra.mxu0 0.0
        %527 = vmatprep.subr.mxu0 0.0
        %528 = vmatpush1.msra.mxu0 0.0
        %529 = vmatprep.subr.mxu0 0.0
        %530 = vmatpush1.msra.mxu0 0.0
        %531 = vmatprep.subr.mxu0 0.0
        %532 = vmatpush1.msra.mxu0 0.0
        %533 = vmatprep.subr.mxu0 0.0
        %534 = vmatpush1.msra.mxu0 0.0
        %535 = vmatprep.subr.mxu0 0.0
        %536 = vmatpush1.msra.mxu0 0.0
        %537 = vmatprep.subr.mxu0 0.0
        %538 = vmatpush1.msra.mxu0 0.0
        %539 = vmatprep.subr.mxu0 0.0
        %540 = vmatpush1.msra.mxu0 0.0
        %541 = vmatprep.subr.mxu0 0.0
        %542 = vmatpush1.msra.mxu0 0.0
        %543 = vmatprep.subr.mxu0 0.0
        %544 = vmatpush1.msra.mxu0 0.0
        %545 = vmatprep.subr.mxu0 0.0
        %546 = vmatpush1.msra.mxu0 0.0
        %547 = vmatprep.subr.mxu0 0.0
        %548 = vmatpush1.msra.mxu0 0.0
        %549 = vmatprep.subr.mxu0 0.0
        %550 = vmatpush1.msra.mxu0 0.0
        %551 = vmatprep.subr.mxu0 0.0
        %552 = vmatpush1.msra.mxu0 0.0
        %553 = vmatprep.subr.mxu0 0.0
        %554 = vmatpush1.msra.mxu0 0.0
        %555 = vmatprep.subr.mxu0 0.0
        %556 = vmatpush1.msra.mxu0 0.0
        %557 = vmatprep.subr.mxu0 0.0
        %558 = vmatpush1.msra.mxu0 0.0
        %559 = vmatprep.subr.mxu0 0.0
        %560 = vmatpush1.msra.mxu0 0.0
        %561 = vmatprep.subr.mxu0 0.0
        %562 = vmatpush1.msra.mxu0 0.0
        %563 = vmatprep.subr.mxu0 0.0
        %564 = vmatpush1.msra.mxu0 0.0
        %565 = vmatprep.subr.mxu0 0.0
        %566 = vmatpush1.msra.mxu0 0.0
        %567 = vmatprep.subr.mxu0 0.0
        %568 = vmatpush1.msra.mxu0 0.0
        %569 = vmatprep.subr.mxu0 0.0
        %570 = vmatpush1.msra.mxu0 0.0
        %571 = vmatprep.subr.mxu0 0.0
        %572 = vmatpush1.msra.mxu0 0.0
        %573 = vmatprep.mubr.f32.mxu0 0.0
        %574 = vmatmul.mubr.f32.gmra.mrb[0].mxu0 %v462
        %v575 = vpop.f32.mrb[0].mxu0
        %v576 = vadd.f32 0.0, %v575
        %v577 = vpop.f32.mrb[0].mxu0
        %578 = vmatprep.mubr.f32.mxu0 0.0
        %579 = vmatmul.mubr.f32.gmra.mrb[0].mxu0 %v465
        %v580 = vpop.f32.mrb[0].mxu0
        %v581 = vadd.f32 0.0, %v580
        %v582 = vpop.f32.mrb[0].mxu0
        %583 = vmatprep.mubr.f32.mxu0 0.0
        %584 = vmatmul.mubr.f32.gmra.mrb[0].mxu0 %v468
        %v585 = vpop.f32.mrb[0].mxu0
        %v586 = vadd.f32 0.0, %v585
        %v587 = vpop.f32.mrb[0].mxu0
        %588 = vmatprep.mubr.f32.mxu0 0.0
        %589 = vmatmul.mubr.f32.gmra.mrb[0].mxu0 %v471
        %v590 = vpop.f32.mrb[0].mxu0
        %v591 = vadd.f32 0.0, %v590
        %v592 = vpop.f32.mrb[0].mxu0
        %593 = vmatprep.mubr.f32.mxu0 0.0
        %594 = vmatmul.mubr.f32.gmra.mrb[0].mxu0 %v474
        %v595 = vpop.f32.mrb[0].mxu0
        %v596 = vadd.f32 0.0, %v595
        %v597 = vpop.f32.mrb[0].mxu0
        %598 = vmatprep.mubr.f32.mxu0 0.0
        %599 = vmatmul.mubr.f32.gmra.mrb[0].mxu0 %v477
        %v600 = vpop.f32.mrb[0].mxu0
        %v601 = vadd.f32 0.0, %v600
        %v602 = vpop.f32.mrb[0].mxu0
        %603 = vmatprep.mubr.f32.mxu0 0.0
        %604 = vmatmul.mubr.f32.gmra.mrb[0].mxu0 %v480
        %v605 = vpop.f32.mrb[0].mxu0
        %v606 = vadd.f32 0.0, %v605
        %v607 = vpop.f32.mrb[0].mxu0
        %608 = vmatprep.mubr.f32.mxu0 0.0
        %609 = vmatmul.mubr.f32.gmra.mrb[0].mxu0 %v483
        %v610 = vpop.f32.mrb[0].mxu0
        %v611 = vadd.f32 0.0, %v610
        %v612 = vpop.f32.mrb[0].mxu0
        %613 = vmatprep.mubr.f32.mxu0 0.0
        %614 = vmatmul.mubr.f32.gmra.mrb[0].mxu0 %v486
        %v615 = vpop.f32.mrb[0].mxu0
        %v616 = vadd.f32 0.0, %v615
        %v617 = vpop.f32.mrb[0].mxu0
        %618 = vmatprep.mubr.f32.mxu0 0.0
        %619 = vmatmul.mubr.f32.gmra.mrb[0].mxu0 %v489
        %v620 = vpop.f32.mrb[0].mxu0
        %v621 = vadd.f32 0.0, %v620
        %v622 = vpop.f32.mrb[0].mxu0
        %623 = vmatprep.mubr.f32.mxu0 0.0
        %624 = vmatmul.mubr.f32.gmra.mrb[0].mxu0 %v492
        %v625 = vpop.f32.mrb[0].mxu0
        %v626 = vadd.f32 0.0, %v625
        %v627 = vpop.f32.mrb[0].mxu0
        %628 = vmatprep.mubr.f32.mxu0 0.0
        %629 = vmatmul.mubr.f32.gmra.mrb[0].mxu0 %v495
        %v630 = vpop.f32.mrb[0].mxu0
        %v631 = vadd.f32 0.0, %v630
        %v632 = vpop.f32.mrb[0].mxu0
        %633 = vmatprep.mubr.f32.mxu0 0.0
        %634 = vmatmul.mubr.f32.gmra.mrb[0].mxu0 %v498
        %v635 = vpop.f32.mrb[0].mxu0
        %v636 = vadd.f32 0.0, %v635
        %v637 = vpop.f32.mrb[0].mxu0
        %638 = vmatprep.mubr.f32.mxu0 0.0
        %639 = vmatmul.mubr.f32.gmra.mrb[0].mxu0 %v501
        %v640 = vpop.f32.mrb[0].mxu0
        %v641 = vadd.f32 0.0, %v640
        %v642 = vpop.f32.mrb[0].mxu0
        %643 = vmatprep.mubr.f32.mxu0 0.0
        %644 = vmatmul.mubr.f32.gmra.mrb[0].mxu0 %v504
        %v645 = vpop.f32.mrb[0].mxu0
        %v646 = vadd.f32 0.0, %v645
        %v647 = vpop.f32.mrb[0].mxu0
        %648 = vmatprep.mubr.f32.mxu0 0.0
        %649 = vmatmul.mubr.f32.gmra.mrb[0].mxu0 %v507
        %v650 = vpop.f32.mrb[0].mxu0
        %v651 = vadd.f32 0.0, %v650
        %v652 = vpop.f32.mrb[0].mxu0
        %653 = vdwg.mxu0
        %654 = vxpose.xlu0.b32.start [1/16] %v576, 128
        %655 = vxpose.xlu0.b32.cont [2/16] %v581, 128
        %656 = vxpose.xlu0.b32.cont [3/16] %v586, 128
        %657 = vxpose.xlu0.b32.cont [4/16] %v591, 128
        %658 = vxpose.xlu0.b32.cont [5/16] 0.0, 128
        %659 = vxpose.xlu0.b32.cont [6/16] 0.0, 128
        %660 = vxpose.xlu0.b32.cont [7/16] 0.0, 128
        %661 = vxpose.xlu0.b32.cont [8/16] 0.0, 128
        %662 = vxpose.xlu0.b32.cont [9/16] 0.0, 128
        %663 = vxpose.xlu0.b32.cont [10/16] 0.0, 128
        %664 = vxpose.xlu0.b32.cont [11/16] 0.0, 128
        %665 = vxpose.xlu0.b32.cont [12/16] 0.0, 128
        %666 = vxpose.xlu0.b32.cont [13/16] 0.0, 128
        %667 = vxpose.xlu0.b32.cont [14/16] 0.0, 128
        %668 = vxpose.xlu0.b32.cont [15/16] 0.0, 128
        %669 = vxpose.xlu0.b32.end [16/16] 0.0, 128
        %v670 = vpop.trf.xlu0
        %v671 = vpop.trf.xlu0
        %v672 = vpop.trf.xlu0
        %v673 = vpop.trf.xlu0
        %v674 = vpop.trf.xlu0
        %v675 = vpop.trf.xlu0
        %v676 = vpop.trf.xlu0
        %v677 = vpop.trf.xlu0
        %v678 = vpop.trf.xlu0
        %v679 = vpop.trf.xlu0
        %v680 = vpop.trf.xlu0
        %v681 = vpop.trf.xlu0
        %v682 = vpop.trf.xlu0
        %v683 = vpop.trf.xlu0
        %v684 = vpop.trf.xlu0
        %v685 = vpop.trf.xlu0
        %686 = vxpose.xlu0.b32.start [1/16] %v596, 128
        %687 = vxpose.xlu0.b32.cont [2/16] %v601, 128
        %688 = vxpose.xlu0.b32.cont [3/16] %v606, 128
        %689 = vxpose.xlu0.b32.cont [4/16] %v611, 128
        %690 = vxpose.xlu0.b32.cont [5/16] 0.0, 128
        %691 = vxpose.xlu0.b32.cont [6/16] 0.0, 128
        %692 = vxpose.xlu0.b32.cont [7/16] 0.0, 128
        %693 = vxpose.xlu0.b32.cont [8/16] 0.0, 128
        %694 = vxpose.xlu0.b32.cont [9/16] 0.0, 128
        %695 = vxpose.xlu0.b32.cont [10/16] 0.0, 128
        %696 = vxpose.xlu0.b32.cont [11/16] 0.0, 128
        %697 = vxpose.xlu0.b32.cont [12/16] 0.0, 128
        %698 = vxpose.xlu0.b32.cont [13/16] 0.0, 128
        %699 = vxpose.xlu0.b32.cont [14/16] 0.0, 128
        %700 = vxpose.xlu0.b32.cont [15/16] 0.0, 128
        %701 = vxpose.xlu0.b32.end [16/16] 0.0, 128
        %v702 = vpop.trf.xlu0
        %v703 = vpop.trf.xlu0
        %v704 = vpop.trf.xlu0
        %v705 = vpop.trf.xlu0
        %v706 = vpop.trf.xlu0
        %v707 = vpop.trf.xlu0
        %v708 = vpop.trf.xlu0
        %v709 = vpop.trf.xlu0
        %v710 = vpop.trf.xlu0
        %v711 = vpop.trf.xlu0
        %v712 = vpop.trf.xlu0
        %v713 = vpop.trf.xlu0
        %v714 = vpop.trf.xlu0
        %v715 = vpop.trf.xlu0
        %v716 = vpop.trf.xlu0
        %v717 = vpop.trf.xlu0
        %718 = vxpose.xlu0.b32.start [1/16] %v616, 128
        %719 = vxpose.xlu0.b32.cont [2/16] %v621, 128
        %720 = vxpose.xlu0.b32.cont [3/16] %v626, 128
        %721 = vxpose.xlu0.b32.cont [4/16] %v631, 128
        %722 = vxpose.xlu0.b32.cont [5/16] 0.0, 128
        %723 = vxpose.xlu0.b32.cont [6/16] 0.0, 128
        %724 = vxpose.xlu0.b32.cont [7/16] 0.0, 128
        %725 = vxpose.xlu0.b32.cont [8/16] 0.0, 128
        %726 = vxpose.xlu0.b32.cont [9/16] 0.0, 128
        %727 = vxpose.xlu0.b32.cont [10/16] 0.0, 128
        %728 = vxpose.xlu0.b32.cont [11/16] 0.0, 128
        %729 = vxpose.xlu0.b32.cont [12/16] 0.0, 128
        %730 = vxpose.xlu0.b32.cont [13/16] 0.0, 128
        %731 = vxpose.xlu0.b32.cont [14/16] 0.0, 128
        %732 = vxpose.xlu0.b32.cont [15/16] 0.0, 128
        %733 = vxpose.xlu0.b32.end [16/16] 0.0, 128
        %v734 = vpop.trf.xlu0
        %v735 = vpop.trf.xlu0
        %v736 = vpop.trf.xlu0
        %v737 = vpop.trf.xlu0
        %v738 = vpop.trf.xlu0
        %v739 = vpop.trf.xlu0
        %v740 = vpop.trf.xlu0
        %v741 = vpop.trf.xlu0
        %v742 = vpop.trf.xlu0
        %v743 = vpop.trf.xlu0
        %v744 = vpop.trf.xlu0
        %v745 = vpop.trf.xlu0
        %v746 = vpop.trf.xlu0
        %v747 = vpop.trf.xlu0
        %v748 = vpop.trf.xlu0
        %v749 = vpop.trf.xlu0
        %750 = vxpose.xlu0.b32.start [1/16] %v636, 128
        %751 = vxpose.xlu0.b32.cont [2/16] %v641, 128
        %752 = vxpose.xlu0.b32.cont [3/16] %v646, 128
        %753 = vxpose.xlu0.b32.cont [4/16] %v651, 128
        %754 = vxpose.xlu0.b32.cont [5/16] 0.0, 128
        %755 = vxpose.xlu0.b32.cont [6/16] 0.0, 128
        %756 = vxpose.xlu0.b32.cont [7/16] 0.0, 128
        %757 = vxpose.xlu0.b32.cont [8/16] 0.0, 128
        %758 = vxpose.xlu0.b32.cont [9/16] 0.0, 128
        %759 = vxpose.xlu0.b32.cont [10/16] 0.0, 128
        %760 = vxpose.xlu0.b32.cont [11/16] 0.0, 128
        %761 = vxpose.xlu0.b32.cont [12/16] 0.0, 128
        %762 = vxpose.xlu0.b32.cont [13/16] 0.0, 128
        %763 = vxpose.xlu0.b32.cont [14/16] 0.0, 128
        %764 = vxpose.xlu0.b32.cont [15/16] 0.0, 128
        %765 = vxpose.xlu0.b32.end [16/16] 0.0, 128
        %v766 = vpop.trf.xlu0
        %v767 = vpop.trf.xlu0
        %v768 = vpop.trf.xlu0
        %v769 = vpop.trf.xlu0
        %v770 = vpop.trf.xlu0
        %v771 = vpop.trf.xlu0
        %v772 = vpop.trf.xlu0
        %v773 = vpop.trf.xlu0
        %v774 = vpop.trf.xlu0
        %v775 = vpop.trf.xlu0
        %v776 = vpop.trf.xlu0
        %v777 = vpop.trf.xlu0
        %v778 = vpop.trf.xlu0
        %v779 = vpop.trf.xlu0
        %v780 = vpop.trf.xlu0
        %v781 = vpop.trf.xlu0
        %vm782 = vcmask 261120
        %783 = vst.msk [vmem:[%s188] sm:$0xff] %vm782, %v670
        %784 = vst.msk [vmem:[%s188 + $0x8] sm:$0xff] %vm782, %v671
        %785 = vst.msk [vmem:[%s188 + $0x10] sm:$0xff] %vm782, %v672
        %786 = vst.msk [vmem:[%s188 + $0x18] sm:$0xff] %vm782, %v673
        %787 = vst.msk [vmem:[%s188 + $0x20] sm:$0xff] %vm782, %v702
        %788 = vst.msk [vmem:[%s188 + $0x28] sm:$0xff] %vm782, %v703
        %789 = vst.msk [vmem:[%s188 + $0x30] sm:$0xff] %vm782, %v704
        %790 = vst.msk [vmem:[%s188 + $0x38] sm:$0xff] %vm782, %v705
        %791 = vst.msk [vmem:[%s188 + $0x40] sm:$0xff] %vm782, %v734
        %792 = vst.msk [vmem:[%s188 + $0x48] sm:$0xff] %vm782, %v735
        %793 = vst.msk [vmem:[%s188 + $0x50] sm:$0xff] %vm782, %v736
        %794 = vst.msk [vmem:[%s188 + $0x58] sm:$0xff] %vm782, %v737
        %795 = vst.msk [vmem:[%s188 + $0x60] sm:$0xff] %vm782, %v766
        %796 = vst.msk [vmem:[%s188 + $0x68] sm:$0xff] %vm782, %v767
        %797 = vst.msk [vmem:[%s188 + $0x70] sm:$0xff] %vm782, %v768
        %798 = vst.msk [vmem:[%s188 + $0x78] sm:$0xff] %vm782, %v769
        %s799 = sand.u32 %s96, 1
        %s800 = scalar_lea.sflag [#allocation4], %s799
        %s801 = sand.u32 %s96, 1
        %s802 = smul.addr %s801, 128
        %s803 = scalar_lea.vmem [#allocation5], %s802
        // Predicated region
        $region37: #{interpolate.1} parent=31 // pred_check
          %p804 = pneg %p106
        $region38: #{interpolate.1} parent=31 // pred_check_branch
          %806 = sbr.rel (%p804) target = $region40
        $region39: #{interpolate.1} parent=31 // pred_region
          %s807 = smul.u32 16, %s20
          %s809 = ssub.s32 2048, 2048
          %810 = vsyncadd %s800, %s809
          %s811 = smul.addr %s807, 128
          %s812 = scalar_lea.hbm %s3, %s811
          %s813 = sshll.u32 %s803, 4
          %s814 = int_to_ptr.vmem [resolvable:$true] %s813
          %819 = dma.vmem_to_hbm [thread:$0]  %s814, 2048, %s812, %s800, 128, 128, 8
        $region40: #{interpolate.1} parent=31 // pred_fallthru
          _
      $region32: #{interpolate.1} parent=5 // pred_fallthru
        _
      %p820 = scmp.le.s32.totalorder 2, %s15
      // Predicated region
      $region41: #{interpolate.1} parent=5 // pred_check
        %p821 = pneg %p820
      $region42: #{interpolate.1} parent=5 // pred_check_branch
        %823 = sbr.rel (%p821) target = $region44
      $region43: #{interpolate.1} parent=5 // pred_region
        %s824 = ssub.s32 %s15, 2
        // Predicated region
        $region45: #{interpolate.1} parent=43 // pred_check
          %p825 = pneg %p112
        $region46: #{interpolate.1} parent=43 // pred_check_branch
          %827 = sbr.rel (%p825) target = $region48
        $region47: #{interpolate.1} parent=43 // pred_region
          %s828 = sand.u32 %s97, 1
          %s829 = scalar_lea.sflag [#allocation4], %s828
          %s830 = sand.u32 %s97, 1
          %s831 = smul.addr %s830, 128
          %s832 = scalar_lea.vmem [#allocation5], %s831
          %833 = dma.done %s829, 2048
        $region48: #{interpolate.1} parent=43 // pred_fallthru
          _
      $region44: #{interpolate.1} parent=5 // pred_fallthru
        _
    $region6: #{interpolate.1} parent=1 // loop_footer
      %s19 = sadd.s32 1, %s15
    $region7: #{interpolate.1} parent=1 // loop_footer_branch
      %14 = sbr.rel target = $region3
    $region8: #{interpolate.1} parent=1 // loop_exit
      _
    %834 = vsyncpa [#allocation3], 1
    %s835 = scalar_lea.sflag [#allocation3], 1
    %836 = vsyncpa %s835, 1
    %837 = vsyncpa [#allocation4], 1
    %s838 = scalar_lea.sflag [#allocation4], 1
    %839 = vsyncpa %s838, 1

</llo_original>
